<compile_context>
chip_gen: v5e
topology: v5e:2x2
jax: 0.10.0
libtpu: 0.0.40
codegen_flags: <defaults>
</compile_context>

<pallas_src>
import jax
import jax.numpy as jnp
import numpy as np
from jax.experimental import pallas as pl
from jax.experimental.pallas import tpu as pltpu

BN_EPS = 1e-5


def _policy_head_kernel(C, HW, eps):
    """Kernel factory.

    Refs:
      x_ref  : [N, C*HW]   f32  VMEM   (NCHW flatten of the input)
      sc_ref : [2*(C+2)]   f32  SMEM   (per out-channel o: conv_w[o,0..C-1], gamma[o], beta[o])
      w2_ref : [2*HW, HW]  bf16 VMEM   (Linear weight, pre-transposed)
      b2_ref : [1, HW]     f32  VMEM   (Linear bias)
      out_ref: [N, HW]     f32  VMEM
    """

    def kernel(x_ref, sc_ref, w2_ref, b2_ref, out_ref):
        x = x_ref[...]                                        # [N, C*HW] f32
        # Load the C lane slices once; reuse for both output channels.
        xs = [x[:, c * HW:(c + 1) * HW] for c in range(C)]    # each [N, HW]

        acc = None
        for o in range(2):
            base = o * (C + 2)
            # Hoist SMEM scalar reads (one sld each).
            w = [sc_ref[base + c] for c in range(C)]
            gamma = sc_ref[base + C]
            beta = sc_ref[base + C + 1]

            # --- 1x1 conv on the VPU (f32): scalar-weight broadcast FMAs.
            #     Conv bias omitted: exactly cancelled by BN mean subtraction.
            y = xs[0] * w[0]
            for c in range(1, C):
                y = y + xs[c] * w[c]                          # [N, HW]

            # --- BatchNorm2d, training mode: biased stats over (N, H, W),
            #     one-pass variance (clamped >= 0), gamma folded into scale.
            mean = jnp.mean(y, axis=(0, 1), keepdims=True)                   # [1,1]
            var = jnp.mean(y * y, axis=(0, 1), keepdims=True) - mean * mean
            var = jnp.maximum(var, 0.0)
            scale = gamma * jax.lax.rsqrt(var + eps)
            shift = beta - mean * scale

            # --- ReLU, then cast the MXU operand to bf16.
            h = jnp.maximum(y * scale + shift, 0.0).astype(jnp.bfloat16)     # [N, HW]

            # --- Linear, split per channel: static lane-aligned slice of w2,
            #     no [N, 2*HW] concat slab, f32 accumulation on the MXU.
            part = jnp.dot(h, w2_ref[o * HW:(o + 1) * HW, :],
                           preferred_element_type=jnp.float32)               # [N, HW]
            acc = part if acc is None else acc + part

        # --- bias + sigmoid, single lane-dense store (HW multiple of 128).
        out_ref[...] = jax.nn.sigmoid(acc + b2_ref[...])

    return kernel


def prepare_params(raw):
    """One-time, init-side parameter packing (NOT per call).

    raw: dict with conv_w [2,C], conv_b [2], bn_gamma [2], bn_beta [2],
         lin_w [HW, 2*HW], lin_b [HW]   (PyTorch layouts).
    """
    C = raw["conv_w"].shape[1]
    HW = raw["lin_b"].shape[0]
    scalars = jnp.concatenate(
        [raw["conv_w"].astype(jnp.float32),                     # [2, C]
         raw["bn_gamma"].reshape(2, 1).astype(jnp.float32),
         raw["bn_beta"].reshape(2, 1).astype(jnp.float32)],
        axis=1).reshape(-1)                                     # [2*(C+2)] 1-D SMEM
    return {
        "scalars": scalars,
        # Pre-transposed + bf16, stored once; no per-call transpose/cast.
        "lin_w_t": raw["lin_w"].T.astype(jnp.bfloat16),         # [2*HW, HW]
        "lin_b": raw["lin_b"].reshape(1, HW).astype(jnp.float32),
        "C": C,
        "HW": HW,
    }


def policy_head_forward(x, prepared):
    """x: [N, C, H, W] float32 (NCHW). Returns [N, H*W] float32."""
    N, C, H, W = x.shape
    HW = H * W
    assert C == prepared["C"] and HW == prepared["HW"]
    assert HW % 128 == 0, "kernel assumes HW is a multiple of 128 (lane-aligned)"

    x_k = x.reshape(N, C * HW)                                  # free NCHW flatten

    cost = pl.CostEstimate(
        flops=2 * N * (2 * HW) * HW,
        transcendentals=N * HW,                                 # sigmoid exp
        bytes_accessed=(prepared["lin_w_t"].size * 2            # bf16 weight DMA
                        + x_k.size * 4 + N * HW * 4 + HW * 4),
    )

    return pl.pallas_call(
        _policy_head_kernel(C, HW, BN_EPS),
        out_shape=jax.ShapeDtypeStruct((N, HW), jnp.float32),
        in_specs=[
            pl.BlockSpec(memory_space=pltpu.MemorySpace.VMEM),   # x       [N, C*HW]
            pl.BlockSpec(memory_space=pltpu.MemorySpace.SMEM),   # scalars [2*(C+2)]
            pl.BlockSpec(memory_space=pltpu.MemorySpace.VMEM),   # W^T     [2*HW, HW] bf16
            pl.BlockSpec(memory_space=pltpu.MemorySpace.VMEM),   # bias    [1, HW]
        ],
        out_specs=pl.BlockSpec(memory_space=pltpu.MemorySpace.VMEM),
        cost_estimate=cost,
    )(x_k, prepared["scalars"], prepared["lin_w_t"], prepared["lin_b"])


def policy_head_reference(x, raw, eps=BN_EPS):
    """Pure-JAX f32 reference mirroring the PyTorch forward (training-mode BN)."""
    hi = jax.lax.Precision.HIGHEST
    y = jnp.einsum("nchw,oc->nohw", x, raw["conv_w"], precision=hi)
    y = y + raw["conv_b"][None, :, None, None]
    mean = y.mean(axis=(0, 2, 3), keepdims=True)
    var = ((y - mean) ** 2).mean(axis=(0, 2, 3), keepdims=True)   # biased variance
    y = (y - mean) / jnp.sqrt(var + eps)
    y = y * raw["bn_gamma"][None, :, None, None] + raw["bn_beta"][None, :, None, None]
    y = jnp.maximum(y, 0.0)
    f = y.reshape(y.shape[0], -1)                                 # NCHW flatten
    logits = jnp.dot(f, raw["lin_w"].T, precision=hi) + raw["lin_b"]
    return jax.nn.sigmoid(logits)


if __name__ == "__main__":
    n_filters, board_edge_len, batch = 4, 16, 2
    HW = board_edge_len ** 2

    key = jax.random.PRNGKey(0)
    ks = jax.random.split(key, 7)
    raw_params = {
        "conv_w": 0.1 * jax.random.normal(ks[0], (2, n_filters), jnp.float32),
        "conv_b": 0.1 * jax.random.normal(ks[1], (2,), jnp.float32),
        "bn_gamma": 1.0 + 0.1 * jax.random.normal(ks[2], (2,), jnp.float32),
        "bn_beta": 0.1 * jax.random.normal(ks[3], (2,), jnp.float32),
        "lin_w": 0.05 * jax.random.normal(ks[4], (HW, 2 * HW), jnp.float32),
        "lin_b": 0.05 * jax.random.normal(ks[5], (HW,), jnp.float32),
    }
    x = jax.random.normal(
        ks[6], (batch, n_filters, board_edge_len, board_edge_len), jnp.float32)

    prepared = prepare_params(raw_params)            # one-time packing (init)
    out = jax.block_until_ready(policy_head_forward(x, prepared))
    ref = policy_head_reference(x, raw_params)

    assert out.shape == (batch, HW)
    # bf16 MXU operands (f32 accumulation) vs f32 HIGHEST-precision reference.
    np.testing.assert_allclose(np.asarray(out), np.asarray(ref),
                               rtol=1e-2, atol=5e-3)
    print("KERNEL_OK")
</pallas_src>

<mosaic_0001>
module attributes {stable_mosaic.version = 11 : i64} {
  func.func @kernel(%arg0: memref<2x1024xf32, #tpu.memory_space<vmem>>, %arg1: memref<12xf32, #tpu.memory_space<smem>>, %arg2: memref<512x256xbf16, #tpu.memory_space<vmem>>, %arg3: memref<1x256xf32, #tpu.memory_space<vmem>>, %arg4: memref<2x256xf32, #tpu.memory_space<vmem>>) attributes {dimension_semantics = [], scalar_prefetch = 0 : i64, scratch_operands = 0 : i64, tpu.core_type = #tpu.core_type<tc>} {
    %c0 = arith.constant 0 : index
    %c0_0 = arith.constant 0 : index
    %0 = vector.load %arg0[%c0, %c0_0] : memref<2x1024xf32, #tpu.memory_space<vmem>>, vector<2x1024xf32>
    %1 = vector.extract_strided_slice %0 {offsets = [0, 0], sizes = [2, 256], strides = [1, 1]} : vector<2x1024xf32> to vector<2x256xf32>
    %2 = vector.extract_strided_slice %0 {offsets = [0, 256], sizes = [2, 256], strides = [1, 1]} : vector<2x1024xf32> to vector<2x256xf32>
    %3 = vector.extract_strided_slice %0 {offsets = [0, 512], sizes = [2, 256], strides = [1, 1]} : vector<2x1024xf32> to vector<2x256xf32>
    %4 = vector.extract_strided_slice %0 {offsets = [0, 768], sizes = [2, 256], strides = [1, 1]} : vector<2x1024xf32> to vector<2x256xf32>
    %c0_1 = arith.constant 0 : index
    %5 = memref.load %arg1[%c0_1] : memref<12xf32, #tpu.memory_space<smem>>
    %c1 = arith.constant 1 : index
    %6 = memref.load %arg1[%c1] : memref<12xf32, #tpu.memory_space<smem>>
    %c2 = arith.constant 2 : index
    %7 = memref.load %arg1[%c2] : memref<12xf32, #tpu.memory_space<smem>>
    %c3 = arith.constant 3 : index
    %8 = memref.load %arg1[%c3] : memref<12xf32, #tpu.memory_space<smem>>
    %c4 = arith.constant 4 : index
    %9 = memref.load %arg1[%c4] : memref<12xf32, #tpu.memory_space<smem>>
    %c5 = arith.constant 5 : index
    %10 = memref.load %arg1[%c5] : memref<12xf32, #tpu.memory_space<smem>>
    %11 = vector.broadcast %5 : f32 to vector<2x256xf32>
    %12 = arith.mulf %1, %11 : vector<2x256xf32>
    %13 = vector.broadcast %6 : f32 to vector<2x256xf32>
    %14 = arith.mulf %2, %13 : vector<2x256xf32>
    %15 = arith.addf %12, %14 : vector<2x256xf32>
    %16 = vector.broadcast %7 : f32 to vector<2x256xf32>
    %17 = arith.mulf %3, %16 : vector<2x256xf32>
    %18 = arith.addf %15, %17 : vector<2x256xf32>
    %19 = vector.broadcast %8 : f32 to vector<2x256xf32>
    %20 = arith.mulf %4, %19 : vector<2x256xf32>
    %21 = arith.addf %18, %20 : vector<2x256xf32>
    %22 = vector.shape_cast %21 : vector<2x256xf32> to vector<1x2x256xf32>
    %cst = arith.constant dense<0.000000e+00> : vector<1xf32>
    %23 = vector.multi_reduction <add>, %22, %cst [1, 2] : vector<1x2x256xf32> to vector<1xf32>
    %24 = vector.shape_cast %23 : vector<1xf32> to vector<1x1x1xf32>
    %25 = vector.extract %24[0, 0, 0] : f32 from vector<1x1x1xf32>
    %26 = vector.broadcast %25 : f32 to vector<1x1xf32>
    %cst_2 = arith.constant 5.120000e+02 : f32
    %27 = vector.broadcast %cst_2 : f32 to vector<1x1xf32>
    %28 = arith.divf %26, %27 : vector<1x1xf32>
    %29 = arith.mulf %21, %21 : vector<2x256xf32>
    %30 = vector.shape_cast %29 : vector<2x256xf32> to vector<1x2x256xf32>
    %cst_3 = arith.constant dense<0.000000e+00> : vector<1xf32>
    %31 = vector.multi_reduction <add>, %30, %cst_3 [1, 2] : vector<1x2x256xf32> to vector<1xf32>
    %32 = vector.shape_cast %31 : vector<1xf32> to vector<1x1x1xf32>
    %33 = vector.extract %32[0, 0, 0] : f32 from vector<1x1x1xf32>
    %34 = vector.broadcast %33 : f32 to vector<1x1xf32>
    %cst_4 = arith.constant 5.120000e+02 : f32
    %35 = vector.broadcast %cst_4 : f32 to vector<1x1xf32>
    %36 = arith.divf %34, %35 : vector<1x1xf32>
    %37 = arith.mulf %28, %28 : vector<1x1xf32>
    %38 = arith.subf %36, %37 : vector<1x1xf32>
    %cst_5 = arith.constant 0.000000e+00 : f32
    %39 = vector.broadcast %cst_5 : f32 to vector<1x1xf32>
    %40 = arith.maximumf %38, %39 : vector<1x1xf32>
    %cst_6 = arith.constant 9.99999974E-6 : f32
    %41 = vector.broadcast %cst_6 : f32 to vector<1x1xf32>
    %42 = arith.addf %40, %41 : vector<1x1xf32>
    %43 = math.rsqrt %42 : vector<1x1xf32>
    %44 = vector.broadcast %9 : f32 to vector<1x1xf32>
    %45 = arith.mulf %44, %43 : vector<1x1xf32>
    %46 = arith.mulf %28, %45 : vector<1x1xf32>
    %47 = vector.broadcast %10 : f32 to vector<1x1xf32>
    %48 = arith.subf %47, %46 : vector<1x1xf32>
    %49 = vector.broadcast %45 : vector<1x1xf32> to vector<2x256xf32>
    %50 = arith.mulf %21, %49 : vector<2x256xf32>
    %51 = vector.broadcast %48 : vector<1x1xf32> to vector<2x256xf32>
    %52 = arith.addf %50, %51 : vector<2x256xf32>
    %cst_7 = arith.constant 0.000000e+00 : f32
    %53 = vector.broadcast %cst_7 : f32 to vector<2x256xf32>
    %54 = arith.maximumf %52, %53 : vector<2x256xf32>
    %55 = arith.truncf %54 : vector<2x256xf32> to vector<2x256xbf16>
    %c0_8 = arith.constant 0 : index
    %c0_9 = arith.constant 0 : index
    %56 = vector.load %arg2[%c0_8, %c0_9] : memref<512x256xbf16, #tpu.memory_space<vmem>>, vector<256x256xbf16>
    %cst_10 = arith.constant dense<0.000000e+00> : vector<2x256xf32>
    %57 = tpu.matmul %55, %56, %cst_10 {dimension_numbers = #tpu.dot_dimension_numbers<[1], [0], [0], [1], [0, 0, 1, 1], [], []>} : vector<2x256xbf16>, vector<256x256xbf16>, vector<2x256xf32> -> vector<2x256xf32>
    %c6 = arith.constant 6 : index
    %58 = memref.load %arg1[%c6] : memref<12xf32, #tpu.memory_space<smem>>
    %c7 = arith.constant 7 : index
    %59 = memref.load %arg1[%c7] : memref<12xf32, #tpu.memory_space<smem>>
    %c8 = arith.constant 8 : index
    %60 = memref.load %arg1[%c8] : memref<12xf32, #tpu.memory_space<smem>>
    %c9 = arith.constant 9 : index
    %61 = memref.load %arg1[%c9] : memref<12xf32, #tpu.memory_space<smem>>
    %c10 = arith.constant 10 : index
    %62 = memref.load %arg1[%c10] : memref<12xf32, #tpu.memory_space<smem>>
    %c11 = arith.constant 11 : index
    %63 = memref.load %arg1[%c11] : memref<12xf32, #tpu.memory_space<smem>>
    %64 = vector.broadcast %58 : f32 to vector<2x256xf32>
    %65 = arith.mulf %1, %64 : vector<2x256xf32>
    %66 = vector.broadcast %59 : f32 to vector<2x256xf32>
    %67 = arith.mulf %2, %66 : vector<2x256xf32>
    %68 = arith.addf %65, %67 : vector<2x256xf32>
    %69 = vector.broadcast %60 : f32 to vector<2x256xf32>
    %70 = arith.mulf %3, %69 : vector<2x256xf32>
    %71 = arith.addf %68, %70 : vector<2x256xf32>
    %72 = vector.broadcast %61 : f32 to vector<2x256xf32>
    %73 = arith.mulf %4, %72 : vector<2x256xf32>
    %74 = arith.addf %71, %73 : vector<2x256xf32>
    %75 = vector.shape_cast %74 : vector<2x256xf32> to vector<1x2x256xf32>
    %cst_11 = arith.constant dense<0.000000e+00> : vector<1xf32>
    %76 = vector.multi_reduction <add>, %75, %cst_11 [1, 2] : vector<1x2x256xf32> to vector<1xf32>
    %77 = vector.shape_cast %76 : vector<1xf32> to vector<1x1x1xf32>
    %78 = vector.extract %77[0, 0, 0] : f32 from vector<1x1x1xf32>
    %79 = vector.broadcast %78 : f32 to vector<1x1xf32>
    %cst_12 = arith.constant 5.120000e+02 : f32
    %80 = vector.broadcast %cst_12 : f32 to vector<1x1xf32>
    %81 = arith.divf %79, %80 : vector<1x1xf32>
    %82 = arith.mulf %74, %74 : vector<2x256xf32>
    %83 = vector.shape_cast %82 : vector<2x256xf32> to vector<1x2x256xf32>
    %cst_13 = arith.constant dense<0.000000e+00> : vector<1xf32>
    %84 = vector.multi_reduction <add>, %83, %cst_13 [1, 2] : vector<1x2x256xf32> to vector<1xf32>
    %85 = vector.shape_cast %84 : vector<1xf32> to vector<1x1x1xf32>
    %86 = vector.extract %85[0, 0, 0] : f32 from vector<1x1x1xf32>
    %87 = vector.broadcast %86 : f32 to vector<1x1xf32>
    %cst_14 = arith.constant 5.120000e+02 : f32
    %88 = vector.broadcast %cst_14 : f32 to vector<1x1xf32>
    %89 = arith.divf %87, %88 : vector<1x1xf32>
    %90 = arith.mulf %81, %81 : vector<1x1xf32>
    %91 = arith.subf %89, %90 : vector<1x1xf32>
    %cst_15 = arith.constant 0.000000e+00 : f32
    %92 = vector.broadcast %cst_15 : f32 to vector<1x1xf32>
    %93 = arith.maximumf %91, %92 : vector<1x1xf32>
    %cst_16 = arith.constant 9.99999974E-6 : f32
    %94 = vector.broadcast %cst_16 : f32 to vector<1x1xf32>
    %95 = arith.addf %93, %94 : vector<1x1xf32>
    %96 = math.rsqrt %95 : vector<1x1xf32>
    %97 = vector.broadcast %62 : f32 to vector<1x1xf32>
    %98 = arith.mulf %97, %96 : vector<1x1xf32>
    %99 = arith.mulf %81, %98 : vector<1x1xf32>
    %100 = vector.broadcast %63 : f32 to vector<1x1xf32>
    %101 = arith.subf %100, %99 : vector<1x1xf32>
    %102 = vector.broadcast %98 : vector<1x1xf32> to vector<2x256xf32>
    %103 = arith.mulf %74, %102 : vector<2x256xf32>
    %104 = vector.broadcast %101 : vector<1x1xf32> to vector<2x256xf32>
    %105 = arith.addf %103, %104 : vector<2x256xf32>
    %cst_17 = arith.constant 0.000000e+00 : f32
    %106 = vector.broadcast %cst_17 : f32 to vector<2x256xf32>
    %107 = arith.maximumf %105, %106 : vector<2x256xf32>
    %108 = arith.truncf %107 : vector<2x256xf32> to vector<2x256xbf16>
    %c256 = arith.constant 256 : index
    %c0_18 = arith.constant 0 : index
    %109 = vector.load %arg2[%c256, %c0_18] : memref<512x256xbf16, #tpu.memory_space<vmem>>, vector<256x256xbf16>
    %cst_19 = arith.constant dense<0.000000e+00> : vector<2x256xf32>
    %110 = tpu.matmul %108, %109, %cst_19 {dimension_numbers = #tpu.dot_dimension_numbers<[1], [0], [0], [1], [0, 0, 1, 1], [], []>} : vector<2x256xbf16>, vector<256x256xbf16>, vector<2x256xf32> -> vector<2x256xf32>
    %111 = arith.addf %57, %110 : vector<2x256xf32>
    %c0_20 = arith.constant 0 : index
    %c0_21 = arith.constant 0 : index
    %112 = vector.load %arg3[%c0_20, %c0_21] : memref<1x256xf32, #tpu.memory_space<vmem>>, vector<1x256xf32>
    %113 = vector.broadcast %112 : vector<1x256xf32> to vector<2x256xf32>
    %114 = arith.addf %111, %113 : vector<2x256xf32>
    %115 = arith.negf %114 : vector<2x256xf32>
    %116 = math.exp %115 : vector<2x256xf32>
    %cst_22 = arith.constant 1.000000e+00 : f32
    %117 = vector.broadcast %cst_22 : f32 to vector<2x256xf32>
    %118 = arith.addf %117, %116 : vector<2x256xf32>
    %119 = arith.divf %117, %118 : vector<2x256xf32>
    %c0_23 = arith.constant 0 : index
    %c0_24 = arith.constant 0 : index
    %120 = vector.load %arg4[%c0_23, %c0_24] : memref<2x256xf32, #tpu.memory_space<vmem>>, vector<2x256xf32>
    tpu.vector_store %arg4[%c0_23, %c0_24], %119 {strides = array<i32>} : memref<2x256xf32, #tpu.memory_space<vmem>>, vector<2x256xf32>,
    return
  }
}

</mosaic_0001>

<llo_original>
// kernel: tpu_custom_call.1
$region0: #{tpu_custom_call.1}
  #allocation0 [shape = 'u32[]', space=smem, size = 0x4, offset = 0x4, fixed_abs, tag = 'smem constant byte address 0x4 - core index']
  #allocation1 [shape = 'u32[72,128]{1,0:T(1,128)}', space=vmem, size = 0x9000, scoped, tag = 'internal scratch']
  %s0 = inlined_call_operand.hbm [shape: f32[2,1024], index: 0, kind: input, shape index: {}]
  %s1 = inlined_call_operand.hbm [shape: f32[12], index: 1, kind: input, shape index: {}]
  %s2 = inlined_call_operand.hbm [shape: bf16[512,256], index: 2, kind: input, shape index: {}]
  %s3 = inlined_call_operand.vmem [shape: f32[1,256], index: 3, kind: input, shape index: {}]
  %s4 = inlined_call_operand.hbm [shape: f32[2,256], index: 4, kind: output, shape index: {}]
  %s5 = sld [smem:[#allocation0]]
  $region38: #{tpu_custom_call.1} parent=0
    _
  %s7 = ssub.s32 1, %s5
  %s8 = scalar_select 0, %s7, %s5
  $region1: #{tpu_custom_call.1} parent=0
    #allocation2 [shape = 'u8[8192]{0}', space=vmem, size = 0x2000, scoped, tag = 'input window, operand 0, single buffered']
    #allocation3 [shape = 's32[1]{0}', space=sflag, size = 0x4, scoped, tag = 'scoped memory for tpu_custom_call.1']
    #allocation4 [shape = 's32[1]{0}', space=sflag, size = 0x4, scoped, tag = 'scoped memory for tpu_custom_call.1']
    #allocation5 [shape = 's32[1]{0}', space=sflag, size = 0x4, scoped, tag = 'scoped memory for tpu_custom_call.1']
    #allocation6 [shape = 'u8[512]{0}', space=smem, size = 0x200, scoped, tag = 'input window, operand 1, single buffered']
    #allocation7 [shape = 'u8[262144]{0}', space=vmem, size = 0x40000, scoped, tag = 'input window, operand 2, single buffered']
    #allocation8 [shape = 's32[1]{0}', space=sflag, size = 0x4, scoped, tag = 'scoped memory for tpu_custom_call.1']
    #allocation9 [shape = 'u8[2048]{0}', space=vmem, size = 0x800, scoped, tag = 'output window, operand 0, single buffered']
    %9 = vsyncpa [#allocation3], 0
    %10 = vsyncpa [#allocation5], 0
    %11 = vsyncpa [#allocation8], 0
    %12 = vsyncpa [#allocation4], 0
    // Predicated region
    $region2: #{tpu_custom_call.1} parent=1 // pred_check
      _
    $region3: #{tpu_custom_call.1} parent=1 // pred_check_branch
      %14 = sbr.rel (0) target = $region5
    $region4: #{tpu_custom_call.1} parent=1 // pred_region
      %16 = vsyncadd [#allocation3], 0
      %s18 = sshll.u32 %s0, 4
      %s19 = int_to_ptr.hbm [resolvable:$true] %s18
      %s20 = sshll.u32 [#allocation2], 4
      %s21 = int_to_ptr.vmem [resolvable:$true] %s20
      %23 = dma.hbm_to_vmem [thread:$0]  %s19, 256, %s21, [#allocation3]
    $region5: #{tpu_custom_call.1} parent=1 // pred_fallthru
      _
    // Predicated region
    $region6: #{tpu_custom_call.1} parent=1 // pred_check
      _
    $region7: #{tpu_custom_call.1} parent=1 // pred_check_branch
      %25 = sbr.rel (0) target = $region9
    $region8: #{tpu_custom_call.1} parent=1 // pred_region
      %27 = vsyncadd [#allocation5], 0
      %s29 = sshll.u32 %s1, 4
      %s30 = int_to_ptr.hbm [resolvable:$true] %s29
      %32 = dma.hbm_to_smem %s30, 16, [#allocation6], [#allocation5]
    $region9: #{tpu_custom_call.1} parent=1 // pred_fallthru
      _
    // Predicated region
    $region10: #{tpu_custom_call.1} parent=1 // pred_check
      _
    $region11: #{tpu_custom_call.1} parent=1 // pred_check_branch
      %34 = sbr.rel (0) target = $region13
    $region12: #{tpu_custom_call.1} parent=1 // pred_region
      %36 = vsyncadd [#allocation8], 0
      %s37 = sshll.u32 %s2, 4
      %s38 = int_to_ptr.hbm [resolvable:$true] %s37
      %s39 = sshll.u32 [#allocation7], 4
      %s40 = int_to_ptr.vmem [resolvable:$true] %s39
      %45 = dma.hbm_to_vmem [thread:$0]  %s38, 8192, %s40, [#allocation8], 128, 128, 8
    $region13: #{tpu_custom_call.1} parent=1 // pred_fallthru
      _
    // Predicated region
    $region14: #{tpu_custom_call.1} parent=1 // pred_check
      _
    $region15: #{tpu_custom_call.1} parent=1 // pred_check_branch
      %47 = sbr.rel (0) target = $region17
    $region16: #{tpu_custom_call.1} parent=1 // pred_region
      _
    $region17: #{tpu_custom_call.1} parent=1 // pred_fallthru
      _
    // Predicated region
    $region18: #{tpu_custom_call.1} parent=1 // pred_check
      _
    $region19: #{tpu_custom_call.1} parent=1 // pred_check_branch
      %49 = sbr.rel (0) target = $region21
    $region20: #{tpu_custom_call.1} parent=1 // pred_region
      %51 = dma.done [#allocation3], 256
    $region21: #{tpu_custom_call.1} parent=1 // pred_fallthru
      _
    // Predicated region
    $region22: #{tpu_custom_call.1} parent=1 // pred_check
      _
    $region23: #{tpu_custom_call.1} parent=1 // pred_check_branch
      %53 = sbr.rel (0) target = $region25
    $region24: #{tpu_custom_call.1} parent=1 // pred_region
      %55 = dma.done [#allocation5], 16
    $region25: #{tpu_custom_call.1} parent=1 // pred_fallthru
      _
    // Predicated region
    $region26: #{tpu_custom_call.1} parent=1 // pred_check
      _
    $region27: #{tpu_custom_call.1} parent=1 // pred_check_branch
      %57 = sbr.rel (0) target = $region29
    $region28: #{tpu_custom_call.1} parent=1 // pred_region
      %59 = dma.done [#allocation8], 8192
    $region29: #{tpu_custom_call.1} parent=1 // pred_fallthru
      _
    %60 = sfence
    %v61 = vld [vmem:[#allocation2] sm:$0xff]
    %v62 = vld [vmem:[#allocation2 + $0x8] sm:$0xff]
    %s63 = sld [smem:[#allocation6]]
    %s64 = sld [smem:[#allocation6 + $0x1]]
    %s65 = sld [smem:[#allocation6 + $0x2]]
    %s66 = sld [smem:[#allocation6 + $0x3]]
    %s67 = sld [smem:[#allocation6 + $0x4]]
    %s68 = sld [smem:[#allocation6 + $0x5]]
    %v69 = vstv %s63
    %v70 = vmul.f32 %v61, %v69
    %v71 = vstv %s64
    %v73 = vrot.slane %v61, 4
    %v75 = vmul.f32 %v73, %v71
    %v76 = vadd.f32 %v70, %v75
    %v77 = vstv %s65
    %v78 = vmul.f32 %v62, %v77
    %v79 = vadd.f32 %v76, %v78
    %v80 = vstv %s66
    %v82 = vrot.slane %v62, 4
    %v84 = vmul.f32 %v82, %v80
    %v85 = vadd.f32 %v79, %v84
    %87 = vst [vmem:[#allocation1] ss:$4 sm:$0xff] %v85
    %v88 = vld.sshfl [vmem:[#allocation1] sm:$0xff pattern:$0x73625140]
    %v89 = vld.sshfl [vmem:[#allocation1 + $0x8] sm:$0xff pattern:$0x73625140]
    %vm92 = vcmask 1041408
    %v93 = vsel %vm92, %v88, 0.0
    %v94 = vsel %vm92, %v89, 0.0
    %v95 = vadd.f32 %v93, %v94
    %96 = vadd.xlane.f32.xlu0 %v95
    %v97 = vpop.xlane.xlu0 %96
    %v98 = vrot.slane %v97, 4
    %v99 = vadd.f32 %v97, %v98
    %v100 = vrot.slane %v99, 2
    %v101 = vadd.f32 %v99, %v100
    %v102 = vrot.slane %v101, 1
    %v103 = vadd.f32 %v101, %v102
    %s104 = vtos %v103
    %v105 = vstv %s104
    %v106 = vrcp.pop 512.0
    %v107 = vmul.f32 512.0, %v106
    %v108 = vsub.f32 1.0, %v107
    %v109 = vmul.f32 %v106, %v108
    %v110 = vadd.f32 %v106, %v109
    %vm111 = vweird.f32 %v106
    %v112 = vsel %vm111, %v106, %v110
    %v113 = vmul.f32 %v105, %v112
    %v114 = vmul.f32 %v85, %v85
    %116 = vst [vmem:[#allocation1] ss:$4 sm:$0xff] %v114
    %v117 = vld.sshfl [vmem:[#allocation1] sm:$0xff pattern:$0x73625140]
    %v118 = vld.sshfl [vmem:[#allocation1 + $0x8] sm:$0xff pattern:$0x73625140]
    %v121 = vsel %vm92, %v117, 0.0
    %v122 = vsel %vm92, %v118, 0.0
    %v123 = vadd.f32 %v121, %v122
    %124 = vadd.xlane.f32.xlu0 %v123
    %v125 = vpop.xlane.xlu0 %124
    %v126 = vrot.slane %v125, 4
    %v127 = vadd.f32 %v125, %v126
    %v128 = vrot.slane %v127, 2
    %v129 = vadd.f32 %v127, %v128
    %v130 = vrot.slane %v129, 1
    %v131 = vadd.f32 %v129, %v130
    %s132 = vtos %v131
    %v133 = vstv %s132
    %v134 = vmul.f32 %v133, %v112
    %v135 = vmul.f32 %v113, %v113
    %v136 = vsub.f32 %v134, %v135
    %v137 = vmax.f32 %v136, 0.0
    %v138 = vadd.f32 %v137, 1e-05
    %v139 = vrsqrt.pop %v138
    %v140 = vmul.f32 %v139, %v138
    %v141 = vmul.f32 %v140, %v139
    %v142 = vmul.f32 0.5, %v141
    %v143 = vsub.f32 1.5, %v142
    %v144 = vmul.f32 %v139, %v143
    %vm145 = vweird.f32 %v138
    %vm146 = vweird.f32 %v139
    %vm147 = vmor %vm145, %vm146
    %v148 = vsel %vm147, %v139, %v144
    %v149 = vstv %s67
    %v150 = vmul.f32 %v149, %v148
    %v151 = vmul.f32 %v113, %v150
    %v152 = vstv %s68
    %v153 = vsub.f32 %v152, %v151
    %v154 = vmul.f32 %v85, %v150
    %v155 = vadd.f32 %v154, %v153
    %v156 = vmax.f32 %v155, 0.0
    %158 = vst [vmem:[#allocation1] ss:$4 sm:$0xff] %v156
    %v159 = vld.sshfl [vmem:[#allocation1] sm:$0xff pattern:$0x73625140]
    %v160 = vld.sshfl [vmem:[#allocation1 + $0x8] sm:$0xff pattern:$0x73625140]
    %v163 = vpack.c.bf16 %v159, %v159
    %v164 = vpack.c.bf16 %v160, %v160
    %v165 = vld [vmem:[#allocation7] sm:$0xff]
    %v166 = vld [vmem:[#allocation7 + $0x8] sm:$0xff]
    %v167 = vld [vmem:[#allocation7 + $0x10] sm:$0xff]
    %v168 = vld [vmem:[#allocation7 + $0x18] sm:$0xff]
    %v169 = vld [vmem:[#allocation7 + $0x20] sm:$0xff]
    %v170 = vld [vmem:[#allocation7 + $0x28] sm:$0xff]
    %v171 = vld [vmem:[#allocation7 + $0x30] sm:$0xff]
    %v172 = vld [vmem:[#allocation7 + $0x38] sm:$0xff]
    %v173 = vld [vmem:[#allocation7 + $0x40] sm:$0xff]
    %v174 = vld [vmem:[#allocation7 + $0x48] sm:$0xff]
    %v175 = vld [vmem:[#allocation7 + $0x50] sm:$0xff]
    %v176 = vld [vmem:[#allocation7 + $0x58] sm:$0xff]
    %v177 = vld [vmem:[#allocation7 + $0x60] sm:$0xff]
    %v178 = vld [vmem:[#allocation7 + $0x68] sm:$0xff]
    %v179 = vld [vmem:[#allocation7 + $0x70] sm:$0xff]
    %v180 = vld [vmem:[#allocation7 + $0x78] sm:$0xff]
    %v181 = vld [vmem:[#allocation7 + $0x80] sm:$0xff]
    %v182 = vld [vmem:[#allocation7 + $0x88] sm:$0xff]
    %v183 = vld [vmem:[#allocation7 + $0x90] sm:$0xff]
    %v184 = vld [vmem:[#allocation7 + $0x98] sm:$0xff]
    %v185 = vld [vmem:[#allocation7 + $0xa0] sm:$0xff]
    %v186 = vld [vmem:[#allocation7 + $0xa8] sm:$0xff]
    %v187 = vld [vmem:[#allocation7 + $0xb0] sm:$0xff]
    %v188 = vld [vmem:[#allocation7 + $0xb8] sm:$0xff]
    %v189 = vld [vmem:[#allocation7 + $0xc0] sm:$0xff]
    %v190 = vld [vmem:[#allocation7 + $0xc8] sm:$0xff]
    %v191 = vld [vmem:[#allocation7 + $0xd0] sm:$0xff]
    %v192 = vld [vmem:[#allocation7 + $0xd8] sm:$0xff]
    %v193 = vld [vmem:[#allocation7 + $0xe0] sm:$0xff]
    %v194 = vld [vmem:[#allocation7 + $0xe8] sm:$0xff]
    %v195 = vld [vmem:[#allocation7 + $0xf0] sm:$0xff]
    %v196 = vld [vmem:[#allocation7 + $0xf8] sm:$0xff]
    %s197 = sld [smem:[#allocation6 + $0x6]]
    %s198 = sld [smem:[#allocation6 + $0x7]]
    %s199 = sld [smem:[#allocation6 + $0x8]]
    %s200 = sld [smem:[#allocation6 + $0x9]]
    %s201 = sld [smem:[#allocation6 + $0xa]]
    %s202 = sld [smem:[#allocation6 + $0xb]]
    %v203 = vstv %s197
    %v204 = vmul.f32 %v61, %v203
    %v205 = vstv %s198
    %v206 = vmul.f32 %v73, %v205
    %v207 = vadd.f32 %v204, %v206
    %v208 = vstv %s199
    %v209 = vmul.f32 %v62, %v208
    %v210 = vadd.f32 %v207, %v209
    %v211 = vstv %s200
    %v212 = vmul.f32 %v82, %v211
    %v213 = vadd.f32 %v210, %v212
    %215 = vst [vmem:[#allocation1] ss:$4 sm:$0xff] %v213
    %v216 = vld.sshfl [vmem:[#allocation1] sm:$0xff pattern:$0x73625140]
    %v217 = vld.sshfl [vmem:[#allocation1 + $0x8] sm:$0xff pattern:$0x73625140]
    %v220 = vsel %vm92, %v216, 0.0
    %v221 = vsel %vm92, %v217, 0.0
    %v222 = vadd.f32 %v220, %v221
    %223 = vadd.xlane.f32.xlu0 %v222
    %v224 = vpop.xlane.xlu0 %223
    %v225 = vrot.slane %v224, 4
    %v226 = vadd.f32 %v224, %v225
    %v227 = vrot.slane %v226, 2
    %v228 = vadd.f32 %v226, %v227
    %v229 = vrot.slane %v228, 1
    %v230 = vadd.f32 %v228, %v229
    %s231 = vtos %v230
    %v232 = vstv %s231
    %v233 = vmul.f32 %v232, %v112
    %v234 = vmul.f32 %v213, %v213
    %236 = vst [vmem:[#allocation1] ss:$4 sm:$0xff] %v234
    %v237 = vld.sshfl [vmem:[#allocation1] sm:$0xff pattern:$0x73625140]
    %v238 = vld.sshfl [vmem:[#allocation1 + $0x8] sm:$0xff pattern:$0x73625140]
    %v241 = vsel %vm92, %v237, 0.0
    %v242 = vsel %vm92, %v238, 0.0
    %v243 = vadd.f32 %v241, %v242
    %244 = vadd.xlane.f32.xlu0 %v243
    %v245 = vpop.xlane.xlu0 %244
    %v246 = vrot.slane %v245, 4
    %v247 = vadd.f32 %v245, %v246
    %v248 = vrot.slane %v247, 2
    %v249 = vadd.f32 %v247, %v248
    %v250 = vrot.slane %v249, 1
    %v251 = vadd.f32 %v249, %v250
    %s252 = vtos %v251
    %v253 = vstv %s252
    %v254 = vmul.f32 %v253, %v112
    %v255 = vmul.f32 %v233, %v233
    %v256 = vsub.f32 %v254, %v255
    %v257 = vmax.f32 %v256, 0.0
    %v258 = vadd.f32 %v257, 1e-05
    %v259 = vrsqrt.pop %v258
    %v260 = vmul.f32 %v259, %v258
    %v261 = vmul.f32 %v260, %v259
    %v262 = vmul.f32 0.5, %v261
    %v263 = vsub.f32 1.5, %v262
    %v264 = vmul.f32 %v259, %v263
    %vm265 = vweird.f32 %v258
    %vm266 = vweird.f32 %v259
    %vm267 = vmor %vm265, %vm266
    %v268 = vsel %vm267, %v259, %v264
    %v269 = vstv %s201
    %v270 = vmul.f32 %v269, %v268
    %v271 = vmul.f32 %v233, %v270
    %v272 = vstv %s202
    %v273 = vsub.f32 %v272, %v271
    %v274 = vmul.f32 %v213, %v270
    %v275 = vadd.f32 %v274, %v273
    %v276 = vmax.f32 %v275, 0.0
    %278 = vst [vmem:[#allocation1] ss:$4 sm:$0xff] %v276
    %v279 = vld.sshfl [vmem:[#allocation1] sm:$0xff pattern:$0x73625140]
    %v280 = vld.sshfl [vmem:[#allocation1 + $0x8] sm:$0xff pattern:$0x73625140]
    %v283 = vpack.c.bf16 %v279, %v279
    %v284 = vpack.c.bf16 %v280, %v280
    %v285 = vld [vmem:[#allocation7 + $0x100] sm:$0xff]
    %v286 = vld [vmem:[#allocation7 + $0x108] sm:$0xff]
    %v287 = vld [vmem:[#allocation7 + $0x110] sm:$0xff]
    %v288 = vld [vmem:[#allocation7 + $0x118] sm:$0xff]
    %v289 = vld [vmem:[#allocation7 + $0x120] sm:$0xff]
    %v290 = vld [vmem:[#allocation7 + $0x128] sm:$0xff]
    %v291 = vld [vmem:[#allocation7 + $0x130] sm:$0xff]
    %v292 = vld [vmem:[#allocation7 + $0x138] sm:$0xff]
    %v293 = vld [vmem:[#allocation7 + $0x140] sm:$0xff]
    %v294 = vld [vmem:[#allocation7 + $0x148] sm:$0xff]
    %v295 = vld [vmem:[#allocation7 + $0x150] sm:$0xff]
    %v296 = vld [vmem:[#allocation7 + $0x158] sm:$0xff]
    %v297 = vld [vmem:[#allocation7 + $0x160] sm:$0xff]
    %v298 = vld [vmem:[#allocation7 + $0x168] sm:$0xff]
    %v299 = vld [vmem:[#allocation7 + $0x170] sm:$0xff]
    %v300 = vld [vmem:[#allocation7 + $0x178] sm:$0xff]
    %v301 = vld [vmem:[#allocation7 + $0x180] sm:$0xff]
    %v302 = vld [vmem:[#allocation7 + $0x188] sm:$0xff]
    %v303 = vld [vmem:[#allocation7 + $0x190] sm:$0xff]
    %v304 = vld [vmem:[#allocation7 + $0x198] sm:$0xff]
    %v305 = vld [vmem:[#allocation7 + $0x1a0] sm:$0xff]
    %v306 = vld [vmem:[#allocation7 + $0x1a8] sm:$0xff]
    %v307 = vld [vmem:[#allocation7 + $0x1b0] sm:$0xff]
    %v308 = vld [vmem:[#allocation7 + $0x1b8] sm:$0xff]
    %v309 = vld [vmem:[#allocation7 + $0x1c0] sm:$0xff]
    %v310 = vld [vmem:[#allocation7 + $0x1c8] sm:$0xff]
    %v311 = vld [vmem:[#allocation7 + $0x1d0] sm:$0xff]
    %v312 = vld [vmem:[#allocation7 + $0x1d8] sm:$0xff]
    %v313 = vld [vmem:[#allocation7 + $0x1e0] sm:$0xff]
    %v314 = vld [vmem:[#allocation7 + $0x1e8] sm:$0xff]
    %v315 = vld [vmem:[#allocation7 + $0x1f0] sm:$0xff]
    %v316 = vld [vmem:[#allocation7 + $0x1f8] sm:$0xff]
    %v349 = vunpack.c.l.b16 %v285
    %v350 = vunpack.c.h.b16 %v285
    %v351 = vunpack.c.l.b16 %v286
    %v352 = vunpack.c.h.b16 %v286
    %v353 = vunpack.c.l.b16 %v287
    %v354 = vunpack.c.h.b16 %v287
    %v355 = vunpack.c.l.b16 %v288
    %v356 = vunpack.c.h.b16 %v288
    %v357 = vunpack.c.l.b16 %v289
    %v358 = vunpack.c.h.b16 %v289
    %v359 = vunpack.c.l.b16 %v290
    %v360 = vunpack.c.h.b16 %v290
    %v361 = vunpack.c.l.b16 %v291
    %v362 = vunpack.c.h.b16 %v291
    %v363 = vunpack.c.l.b16 %v292
    %v364 = vunpack.c.h.b16 %v292
    %v365 = vunpack.c.l.b16 %v293
    %v366 = vunpack.c.h.b16 %v293
    %v367 = vunpack.c.l.b16 %v294
    %v368 = vunpack.c.h.b16 %v294
    %v369 = vunpack.c.l.b16 %v295
    %v370 = vunpack.c.h.b16 %v295
    %v371 = vunpack.c.l.b16 %v296
    %v372 = vunpack.c.h.b16 %v296
    %v373 = vunpack.c.l.b16 %v297
    %v374 = vunpack.c.h.b16 %v297
    %v375 = vunpack.c.l.b16 %v298
    %v376 = vunpack.c.h.b16 %v298
    %v377 = vunpack.c.l.b16 %v299
    %v378 = vunpack.c.h.b16 %v299
    %v379 = vunpack.c.l.b16 %v300
    %v380 = vunpack.c.h.b16 %v300
    %v381 = vunpack.c.l.b16 %v301
    %v382 = vunpack.c.h.b16 %v301
    %v383 = vunpack.c.l.b16 %v302
    %v384 = vunpack.c.h.b16 %v302
    %v385 = vunpack.c.l.b16 %v303
    %v386 = vunpack.c.h.b16 %v303
    %v387 = vunpack.c.l.b16 %v304
    %v388 = vunpack.c.h.b16 %v304
    %v389 = vunpack.c.l.b16 %v305
    %v390 = vunpack.c.h.b16 %v305
    %v391 = vunpack.c.l.b16 %v306
    %v392 = vunpack.c.h.b16 %v306
    %v393 = vunpack.c.l.b16 %v307
    %v394 = vunpack.c.h.b16 %v307
    %v395 = vunpack.c.l.b16 %v308
    %v396 = vunpack.c.h.b16 %v308
    %v397 = vunpack.c.l.b16 %v309
    %v398 = vunpack.c.h.b16 %v309
    %v399 = vunpack.c.l.b16 %v310
    %v400 = vunpack.c.h.b16 %v310
    %v401 = vunpack.c.l.b16 %v311
    %v402 = vunpack.c.h.b16 %v311
    %v403 = vunpack.c.l.b16 %v312
    %v404 = vunpack.c.h.b16 %v312
    %v405 = vunpack.c.l.b16 %v313
    %v406 = vunpack.c.h.b16 %v313
    %v407 = vunpack.c.l.b16 %v314
    %v408 = vunpack.c.h.b16 %v314
    %v409 = vunpack.c.l.b16 %v315
    %v410 = vunpack.c.h.b16 %v315
    %v411 = vunpack.c.l.b16 %v316
    %v412 = vunpack.c.h.b16 %v316
    %v413 = vpack.c.b16 %v351, %v349
    %v414 = vpack.c.b16 %v352, %v350
    %v415 = vpack.c.b16 %v355, %v353
    %v416 = vpack.c.b16 %v356, %v354
    %v417 = vpack.c.b16 %v359, %v357
    %v418 = vpack.c.b16 %v360, %v358
    %v419 = vpack.c.b16 %v363, %v361
    %v420 = vpack.c.b16 %v364, %v362
    %v421 = vpack.c.b16 %v367, %v365
    %v422 = vpack.c.b16 %v368, %v366
    %v423 = vpack.c.b16 %v371, %v369
    %v424 = vpack.c.b16 %v372, %v370
    %v425 = vpack.c.b16 %v375, %v373
    %v426 = vpack.c.b16 %v376, %v374
    %v427 = vpack.c.b16 %v379, %v377
    %v428 = vpack.c.b16 %v380, %v378
    %v429 = vpack.c.b16 %v383, %v381
    %v430 = vpack.c.b16 %v384, %v382
    %v431 = vpack.c.b16 %v387, %v385
    %v432 = vpack.c.b16 %v388, %v386
    %v433 = vpack.c.b16 %v391, %v389
    %v434 = vpack.c.b16 %v392, %v390
    %v435 = vpack.c.b16 %v395, %v393
    %v436 = vpack.c.b16 %v396, %v394
    %v437 = vpack.c.b16 %v399, %v397
    %v438 = vpack.c.b16 %v400, %v398
    %v439 = vpack.c.b16 %v403, %v401
    %v440 = vpack.c.b16 %v404, %v402
    %v441 = vpack.c.b16 %v407, %v405
    %v442 = vpack.c.b16 %v408, %v406
    %v443 = vpack.c.b16 %v411, %v409
    %v444 = vpack.c.b16 %v412, %v410
    %477 = vmatpush.bf16.msra.mxu0 %v427
    %478 = vmatpush.bf16.msra.mxu0 %v425
    %479 = vmatpush.bf16.msra.mxu0 %v423
    %480 = vmatpush.bf16.msra.mxu0 %v421
    %481 = vmatpush.bf16.msra.mxu0 %v419
    %482 = vmatpush.bf16.msra.mxu0 %v417
    %483 = vmatpush.bf16.msra.mxu0 %v415
    %484 = vmatpush.bf16.msra.mxu0 %v413
    %485 = vmatmul.bf16.gmra.mxu0 %v283
    %v486 = vpop.f32.mrf.mxu0
    %v487 = vadd.f32 0.0, %v486
    %v488 = vpop.f32.mrf.mxu0
    %489 = vdwg.mxu0
    %490 = vmatpush.bf16.msra.mxu0 %v443
    %491 = vmatpush.bf16.msra.mxu0 %v441
    %492 = vmatpush.bf16.msra.mxu0 %v439
    %493 = vmatpush.bf16.msra.mxu0 %v437
    %494 = vmatpush.bf16.msra.mxu0 %v435
    %495 = vmatpush.bf16.msra.mxu0 %v433
    %496 = vmatpush.bf16.msra.mxu0 %v431
    %497 = vmatpush.bf16.msra.mxu0 %v429
    %498 = vmatmul.bf16.gmra.mxu0 %v284
    %v499 = vpop.f32.mrf.mxu0
    %v500 = vadd.f32 %v487, %v499
    %v501 = vpop.f32.mrf.mxu0
    %502 = vdwg.mxu0
    %503 = vmatpush.bf16.msra.mxu0 %v428
    %504 = vmatpush.bf16.msra.mxu0 %v426
    %505 = vmatpush.bf16.msra.mxu0 %v424
    %506 = vmatpush.bf16.msra.mxu0 %v422
    %507 = vmatpush.bf16.msra.mxu0 %v420
    %508 = vmatpush.bf16.msra.mxu0 %v418
    %509 = vmatpush.bf16.msra.mxu0 %v416
    %510 = vmatpush.bf16.msra.mxu0 %v414
    %511 = vmatmul.bf16.gmra.mxu0 %v283
    %v512 = vpop.f32.mrf.mxu0
    %v513 = vadd.f32 0.0, %v512
    %v514 = vpop.f32.mrf.mxu0
    %515 = vdwg.mxu0
    %516 = vmatpush.bf16.msra.mxu0 %v444
    %517 = vmatpush.bf16.msra.mxu0 %v442
    %518 = vmatpush.bf16.msra.mxu0 %v440
    %519 = vmatpush.bf16.msra.mxu0 %v438
    %520 = vmatpush.bf16.msra.mxu0 %v436
    %521 = vmatpush.bf16.msra.mxu0 %v434
    %522 = vmatpush.bf16.msra.mxu0 %v432
    %523 = vmatpush.bf16.msra.mxu0 %v430
    %524 = vmatmul.bf16.gmra.mxu0 %v284
    %v525 = vpop.f32.mrf.mxu0
    %v526 = vadd.f32 %v513, %v525
    %v527 = vpop.f32.mrf.mxu0
    %528 = vdwg.mxu0
    %v561 = vunpack.c.l.b16 %v165
    %v562 = vunpack.c.h.b16 %v165
    %v563 = vunpack.c.l.b16 %v166
    %v564 = vunpack.c.h.b16 %v166
    %v565 = vunpack.c.l.b16 %v167
    %v566 = vunpack.c.h.b16 %v167
    %v567 = vunpack.c.l.b16 %v168
    %v568 = vunpack.c.h.b16 %v168
    %v569 = vunpack.c.l.b16 %v169
    %v570 = vunpack.c.h.b16 %v169
    %v571 = vunpack.c.l.b16 %v170
    %v572 = vunpack.c.h.b16 %v170
    %v573 = vunpack.c.l.b16 %v171
    %v574 = vunpack.c.h.b16 %v171
    %v575 = vunpack.c.l.b16 %v172
    %v576 = vunpack.c.h.b16 %v172
    %v577 = vunpack.c.l.b16 %v173
    %v578 = vunpack.c.h.b16 %v173
    %v579 = vunpack.c.l.b16 %v174
    %v580 = vunpack.c.h.b16 %v174
    %v581 = vunpack.c.l.b16 %v175
    %v582 = vunpack.c.h.b16 %v175
    %v583 = vunpack.c.l.b16 %v176
    %v584 = vunpack.c.h.b16 %v176
    %v585 = vunpack.c.l.b16 %v177
    %v586 = vunpack.c.h.b16 %v177
    %v587 = vunpack.c.l.b16 %v178
    %v588 = vunpack.c.h.b16 %v178
    %v589 = vunpack.c.l.b16 %v179
    %v590 = vunpack.c.h.b16 %v179
    %v591 = vunpack.c.l.b16 %v180
    %v592 = vunpack.c.h.b16 %v180
    %v593 = vunpack.c.l.b16 %v181
    %v594 = vunpack.c.h.b16 %v181
    %v595 = vunpack.c.l.b16 %v182
    %v596 = vunpack.c.h.b16 %v182
    %v597 = vunpack.c.l.b16 %v183
    %v598 = vunpack.c.h.b16 %v183
    %v599 = vunpack.c.l.b16 %v184
    %v600 = vunpack.c.h.b16 %v184
    %v601 = vunpack.c.l.b16 %v185
    %v602 = vunpack.c.h.b16 %v185
    %v603 = vunpack.c.l.b16 %v186
    %v604 = vunpack.c.h.b16 %v186
    %v605 = vunpack.c.l.b16 %v187
    %v606 = vunpack.c.h.b16 %v187
    %v607 = vunpack.c.l.b16 %v188
    %v608 = vunpack.c.h.b16 %v188
    %v609 = vunpack.c.l.b16 %v189
    %v610 = vunpack.c.h.b16 %v189
    %v611 = vunpack.c.l.b16 %v190
    %v612 = vunpack.c.h.b16 %v190
    %v613 = vunpack.c.l.b16 %v191
    %v614 = vunpack.c.h.b16 %v191
    %v615 = vunpack.c.l.b16 %v192
    %v616 = vunpack.c.h.b16 %v192
    %v617 = vunpack.c.l.b16 %v193
    %v618 = vunpack.c.h.b16 %v193
    %v619 = vunpack.c.l.b16 %v194
    %v620 = vunpack.c.h.b16 %v194
    %v621 = vunpack.c.l.b16 %v195
    %v622 = vunpack.c.h.b16 %v195
    %v623 = vunpack.c.l.b16 %v196
    %v624 = vunpack.c.h.b16 %v196
    %v625 = vpack.c.b16 %v563, %v561
    %v626 = vpack.c.b16 %v564, %v562
    %v627 = vpack.c.b16 %v567, %v565
    %v628 = vpack.c.b16 %v568, %v566
    %v629 = vpack.c.b16 %v571, %v569
    %v630 = vpack.c.b16 %v572, %v570
    %v631 = vpack.c.b16 %v575, %v573
    %v632 = vpack.c.b16 %v576, %v574
    %v633 = vpack.c.b16 %v579, %v577
    %v634 = vpack.c.b16 %v580, %v578
    %v635 = vpack.c.b16 %v583, %v581
    %v636 = vpack.c.b16 %v584, %v582
    %v637 = vpack.c.b16 %v587, %v585
    %v638 = vpack.c.b16 %v588, %v586
    %v639 = vpack.c.b16 %v591, %v589
    %v640 = vpack.c.b16 %v592, %v590
    %v641 = vpack.c.b16 %v595, %v593
    %v642 = vpack.c.b16 %v596, %v594
    %v643 = vpack.c.b16 %v599, %v597
    %v644 = vpack.c.b16 %v600, %v598
    %v645 = vpack.c.b16 %v603, %v601
    %v646 = vpack.c.b16 %v604, %v602
    %v647 = vpack.c.b16 %v607, %v605
    %v648 = vpack.c.b16 %v608, %v606
    %v649 = vpack.c.b16 %v611, %v609
    %v650 = vpack.c.b16 %v612, %v610
    %v651 = vpack.c.b16 %v615, %v613
    %v652 = vpack.c.b16 %v616, %v614
    %v653 = vpack.c.b16 %v619, %v617
    %v654 = vpack.c.b16 %v620, %v618
    %v655 = vpack.c.b16 %v623, %v621
    %v656 = vpack.c.b16 %v624, %v622
    %689 = vmatpush.bf16.msra.mxu0 %v639
    %690 = vmatpush.bf16.msra.mxu0 %v637
    %691 = vmatpush.bf16.msra.mxu0 %v635
    %692 = vmatpush.bf16.msra.mxu0 %v633
    %693 = vmatpush.bf16.msra.mxu0 %v631
    %694 = vmatpush.bf16.msra.mxu0 %v629
    %695 = vmatpush.bf16.msra.mxu0 %v627
    %696 = vmatpush.bf16.msra.mxu0 %v625
    %697 = vmatmul.bf16.gmra.mxu0 %v163
    %v698 = vpop.f32.mrf.mxu0
    %v699 = vadd.f32 %v500, %v698
    %v700 = vpop.f32.mrf.mxu0
    %701 = vdwg.mxu0
    %702 = vmatpush.bf16.msra.mxu0 %v655
    %703 = vmatpush.bf16.msra.mxu0 %v653
    %704 = vmatpush.bf16.msra.mxu0 %v651
    %705 = vmatpush.bf16.msra.mxu0 %v649
    %706 = vmatpush.bf16.msra.mxu0 %v647
    %707 = vmatpush.bf16.msra.mxu0 %v645
    %708 = vmatpush.bf16.msra.mxu0 %v643
    %709 = vmatpush.bf16.msra.mxu0 %v641
    %710 = vmatmul.bf16.gmra.mxu0 %v164
    %v711 = vpop.f32.mrf.mxu0
    %v712 = vadd.f32 %v699, %v711
    %v713 = vpop.f32.mrf.mxu0
    %714 = vdwg.mxu0
    %715 = vmatpush.bf16.msra.mxu0 %v640
    %716 = vmatpush.bf16.msra.mxu0 %v638
    %717 = vmatpush.bf16.msra.mxu0 %v636
    %718 = vmatpush.bf16.msra.mxu0 %v634
    %719 = vmatpush.bf16.msra.mxu0 %v632
    %720 = vmatpush.bf16.msra.mxu0 %v630
    %721 = vmatpush.bf16.msra.mxu0 %v628
    %722 = vmatpush.bf16.msra.mxu0 %v626
    %723 = vmatmul.bf16.gmra.mxu0 %v163
    %v724 = vpop.f32.mrf.mxu0
    %v725 = vadd.f32 %v526, %v724
    %v726 = vpop.f32.mrf.mxu0
    %727 = vdwg.mxu0
    %728 = vmatpush.bf16.msra.mxu0 %v656
    %729 = vmatpush.bf16.msra.mxu0 %v654
    %730 = vmatpush.bf16.msra.mxu0 %v652
    %731 = vmatpush.bf16.msra.mxu0 %v650
    %732 = vmatpush.bf16.msra.mxu0 %v648
    %733 = vmatpush.bf16.msra.mxu0 %v646
    %734 = vmatpush.bf16.msra.mxu0 %v644
    %735 = vmatpush.bf16.msra.mxu0 %v642
    %736 = vmatmul.bf16.gmra.mxu0 %v164
    %v737 = vpop.f32.mrf.mxu0
    %v738 = vadd.f32 %v725, %v737
    %v739 = vpop.f32.mrf.mxu0
    %740 = vdwg.mxu0
    %v741 = vld [vmem:[%s3] sm:$0x3]
    %v743 = vperm.slane %v741, 0
    %v744 = vperm.slane %v741, 1
    %v747 = vadd.f32 %v712, %v743
    %v748 = vadd.f32 %v738, %v744
    %v749 = vxor.u32 %v747, 2147483648
    %v750 = vxor.u32 %v748, 2147483648
    %v751 = vmul.f32 %v749, 1.442695
    %v752 = vpow.pop %v751
    %v753 = vmul.f32 %v750, 1.442695
    %v754 = vpow.pop %v753
    %v755 = vadd.f32 %v752, 1.0
    %v756 = vadd.f32 %v754, 1.0
    %v757 = vrcp.pop %v755
    %v758 = vmul.f32 %v755, %v757
    %v759 = vsub.f32 1.0, %v758
    %v760 = vmul.f32 %v757, %v759
    %v761 = vadd.f32 %v757, %v760
    %vm762 = vweird.f32 %v755
    %vm763 = vweird.f32 %v757
    %vm764 = vmor %vm762, %vm763
    %v765 = vsel %vm764, %v757, %v761
    %v766 = vand.u32 2147483647, %v755
    %vm767 = vcmp.eq.f32.partialorder %v766, 8.507059e+37
    %v768 = vand.u32 %v755, 2147483648
    %v769 = vor.u32 1.1754944e-38, %v768
    %v770 = vsel %vm767, %v769, %v765
    %v771 = vmul.f32 1.0, %v770
    %v772 = vrcp.pop %v756
    %v773 = vmul.f32 %v756, %v772
    %v774 = vsub.f32 1.0, %v773
    %v775 = vmul.f32 %v772, %v774
    %v776 = vadd.f32 %v772, %v775
    %vm777 = vweird.f32 %v756
    %vm778 = vweird.f32 %v772
    %vm779 = vmor %vm777, %vm778
    %v780 = vsel %vm779, %v772, %v776
    %v781 = vand.u32 2147483647, %v756
    %vm782 = vcmp.eq.f32.partialorder %v781, 8.507059e+37
    %v783 = vand.u32 %v756, 2147483648
    %v784 = vor.u32 1.1754944e-38, %v783
    %v785 = vsel %vm782, %v784, %v780
    %v786 = vmul.f32 1.0, %v785
    %v789 = vrot.slane %v786, 6
    %v790 = vsel %vm92, %v771, %v789
    %792 = vst [vmem:[#allocation9] sm:$0xf] %v790
    // Predicated region
    $region30: #{tpu_custom_call.1} parent=1 // pred_check
      _
    $region31: #{tpu_custom_call.1} parent=1 // pred_check_branch
      %794 = sbr.rel (0) target = $region33
    $region32: #{tpu_custom_call.1} parent=1 // pred_region
      %796 = vsyncadd [#allocation4], 0
      %s798 = sshll.u32 [#allocation9], 4
      %s799 = int_to_ptr.vmem [resolvable:$true] %s798
      %s800 = sshll.u32 %s4, 4
      %s801 = int_to_ptr.hbm [resolvable:$true] %s800
      %803 = dma.vmem_to_hbm [thread:$0]  %s799, 64, %s801, [#allocation4]
    $region33: #{tpu_custom_call.1} parent=1 // pred_fallthru
      _
    // Predicated region
    $region34: #{tpu_custom_call.1} parent=1 // pred_check
      _
    $region35: #{tpu_custom_call.1} parent=1 // pred_check_branch
      %805 = sbr.rel (0) target = $region37
    $region36: #{tpu_custom_call.1} parent=1 // pred_region
      %807 = dma.done [#allocation4], 64
    $region37: #{tpu_custom_call.1} parent=1 // pred_fallthru
      _
    %808 = vsyncpa [#allocation3], 1
    %809 = vsyncpa [#allocation8], 1
    %810 = vsyncpa [#allocation4], 1
    %811 = vsyncpa [#allocation5], 1

</llo_original>
